<compile_context>
chip_gen: v5e
topology: v5e:2x2
jax: 0.10.0
libtpu: 0.0.40
codegen_flags: <defaults>
</compile_context>

<pallas_src>
from functools import partial

import jax
import jax.numpy as jnp
from jax.experimental import pallas as pl
from jax.experimental.pallas import tpu as pltpu

SELU_ALPHA = 1.6732632423543772
SELU_SCALE = 1.0507009873554805

LANE = 128      # TPU lane width (f32)
SUBLANE = 8     # TPU sublane width (f32)

IN_F, HID, OUT_F = 4, 60, 2


def _selu(x):
    return SELU_SCALE * jnp.where(x > 0, x, SELU_ALPHA * (jnp.exp(x) - 1.0))


def mlp_kernel(x_ref, w1_ref, b1_ref, w2_ref, b2_ref, w3_ref, b3_ref, o_ref):
    x = x_ref[...]                                                          # (tb, 4)
    h1 = _selu(jnp.dot(x, w1_ref[...],
                       preferred_element_type=jnp.float32) + b1_ref[...])   # (tb, 128)
    h2 = _selu(jnp.dot(h1, w2_ref[...],
                       preferred_element_type=jnp.float32) + b2_ref[...])   # (tb, 128)
    out = jnp.dot(h2, w3_ref[...],
                  preferred_element_type=jnp.float32) + b3_ref[...]         # (tb, 128)
    # Narrow store: only the OUT_F real lanes go back to HBM.
    o_ref[...] = out[:, :OUT_F].astype(o_ref.dtype)


def _pad2(a, rows, cols):
    r, c = a.shape
    return jnp.pad(a, ((0, rows - r), (0, cols - c)))


def _round_up(x, m):
    return (x + m - 1) // m * m


def prepare_params(w1, b1, w2, b2, w3, b3):
    """One-time lane-dense zero-padding of the parameters (hoisted out of forward)."""
    return (_pad2(w1, IN_F, LANE), _pad2(b1, 1, LANE),
            _pad2(w2, LANE, LANE), _pad2(b2, 1, LANE),
            _pad2(w3, LANE, LANE), _pad2(b3, 1, LANE))


@partial(jax.jit, static_argnames=("tile_b",))
def dqn_forward(x, w1p, b1p, w2p, b2p, w3p, b3p, *, tile_b=2048):
    """x: (B, 4); padded params from prepare_params(). y = x @ W + b (== PyTorch x @ W.T + b)."""
    B = x.shape[0]

    # Tile selection: nearly divide B, sublane-aligned, capped at tile_b.
    num_tiles = max(1, pl.cdiv(B, tile_b))
    # v7x dual-TensorCore: keep the grid length even when there is >1 tile so
    # dimension_semantics=("parallel",) can shard tiles across both cores.
    if num_tiles > 1 and num_tiles % 2 == 1:
        num_tiles += 1
    tb = _round_up(pl.cdiv(B, num_tiles), SUBLANE)
    B_pad = num_tiles * tb

    xp = x if B_pad == B else jnp.pad(x, ((0, B_pad - B), (0, 0)))

    cost = pl.CostEstimate(
        flops=2 * B_pad * (IN_F * HID + HID * HID + HID * OUT_F),
        transcendentals=2 * B_pad * HID,
        bytes_accessed=4 * (B_pad * (IN_F + OUT_F)
                            + IN_F * LANE + 2 * LANE * LANE + 3 * LANE),
    )

    const = lambda shape: pl.BlockSpec(shape, lambda i: (0, 0))  # VMEM-resident params

    out_pad = pl.pallas_call(
        mlp_kernel,
        out_shape=jax.ShapeDtypeStruct((B_pad, OUT_F), jnp.float32),
        grid=(num_tiles,),
        in_specs=[
            pl.BlockSpec((tb, IN_F), lambda i: (i, 0)),
            const(w1p.shape), const(b1p.shape),
            const(w2p.shape), const(b2p.shape),
            const(w3p.shape), const(b3p.shape),
        ],
        out_specs=pl.BlockSpec((tb, OUT_F), lambda i: (i, 0)),
        compiler_params=pltpu.CompilerParams(
            dimension_semantics=("parallel",),
            vmem_limit_bytes=32 * 1024 * 1024,
        ),
        cost_estimate=cost,
    )(xp, w1p, b1p, w2p, b2p, w3p, b3p)

    return out_pad if B_pad == B else out_pad[:B]


def init_params(key):
    # Deterministic synthetic init (PyTorch-like uniform bounds 1/sqrt(fan_in)).
    ks = jax.random.split(key, 6)

    def lin(kw, kb, fan_in, fan_out):
        bound = 1.0 / jnp.sqrt(fan_in)
        w = jax.random.uniform(kw, (fan_in, fan_out), jnp.float32, -bound, bound)
        b = jax.random.uniform(kb, (1, fan_out), jnp.float32, -bound, bound)
        return w, b

    w1, b1 = lin(ks[0], ks[1], IN_F, HID)
    w2, b2 = lin(ks[2], ks[3], HID, HID)
    w3, b3 = lin(ks[4], ks[5], HID, OUT_F)
    return w1, b1, w2, b2, w3, b3


def _reference(x, params):
    w1, b1, w2, b2, w3, b3 = params
    h = jax.nn.selu(x @ w1 + b1)
    h = jax.nn.selu(h @ w2 + b2)
    return h @ w3 + b3


if __name__ == "__main__":
    key = jax.random.PRNGKey(0)
    k_x, k_x2, k_p = jax.random.split(key, 3)

    params = init_params(k_p)
    padded = prepare_params(*params)   # one-time prep, reused across calls

    # Small batch (single tile, no batch padding after sublane rounding).
    B = 8
    x = jax.random.normal(k_x, (B, IN_F), jnp.float32)
    out = jax.block_until_ready(dqn_forward(x, *padded))
    ref = _reference(x, params)
    assert out.shape == (B, OUT_F)
    assert jnp.allclose(out, ref, atol=1e-5), "mismatch vs reference (B=8)"

    # Uneven batch with a small tile cap to exercise multi-tile grid + padding.
    B2 = 300
    x2 = jax.random.normal(k_x2, (B2, IN_F), jnp.float32)
    out2 = jax.block_until_ready(dqn_forward(x2, *padded, tile_b=128))
    ref2 = _reference(x2, params)
    assert out2.shape == (B2, OUT_F)
    assert jnp.allclose(out2, ref2, atol=1e-5), "mismatch vs reference (B=300)"

    print("KERNEL_OK")
</pallas_src>

<mosaic_0001>
module attributes {stable_mosaic.version = 11 : i64} {
  func.func @mlp_kernel(%arg0: i32, %arg1: memref<8x4xf32, #tpu.memory_space<vmem>>, %arg2: memref<4x128xf32, #tpu.memory_space<vmem>>, %arg3: memref<1x128xf32, #tpu.memory_space<vmem>>, %arg4: memref<128x128xf32, #tpu.memory_space<vmem>>, %arg5: memref<1x128xf32, #tpu.memory_space<vmem>>, %arg6: memref<128x128xf32, #tpu.memory_space<vmem>>, %arg7: memref<1x128xf32, #tpu.memory_space<vmem>>, %arg8: memref<8x2xf32, #tpu.memory_space<vmem>>) attributes {dimension_semantics = [#tpu.dimension_semantics<parallel>], iteration_bounds = array<i64: 1>, scalar_prefetch = 0 : i64, scratch_operands = 0 : i64, tpu.core_type = #tpu.core_type<tc>, window_params = [{transform_indices = @transform_0, window_bounds = array<i64: 8, 4>}, {pipeline_mode = #tpu.pipeline_mode<synchronous>, transform_indices = @transform_1, window_bounds = array<i64: 4, 128>}, {pipeline_mode = #tpu.pipeline_mode<synchronous>, transform_indices = @transform_2, window_bounds = array<i64: 1, 128>}, {pipeline_mode = #tpu.pipeline_mode<synchronous>, transform_indices = @transform_3, window_bounds = array<i64: 128, 128>}, {pipeline_mode = #tpu.pipeline_mode<synchronous>, transform_indices = @transform_4, window_bounds = array<i64: 1, 128>}, {pipeline_mode = #tpu.pipeline_mode<synchronous>, transform_indices = @transform_5, window_bounds = array<i64: 128, 128>}, {pipeline_mode = #tpu.pipeline_mode<synchronous>, transform_indices = @transform_6, window_bounds = array<i64: 1, 128>}, {transform_indices = @transform_7, window_bounds = array<i64: 8, 2>}]} {
    %c0 = arith.constant 0 : index
    %c0_0 = arith.constant 0 : index
    %0 = vector.load %arg1[%c0, %c0_0] : memref<8x4xf32, #tpu.memory_space<vmem>>, vector<8x4xf32>
    %c0_1 = arith.constant 0 : index
    %c0_2 = arith.constant 0 : index
    %1 = vector.load %arg2[%c0_1, %c0_2] : memref<4x128xf32, #tpu.memory_space<vmem>>, vector<4x128xf32>
    %cst = arith.constant dense<0.000000e+00> : vector<8x128xf32>
    %2 = tpu.matmul %0, %1, %cst {dimension_numbers = #tpu.dot_dimension_numbers<[1], [0], [0], [1], [0, 0, 1, 1], [], []>} : vector<8x4xf32>, vector<4x128xf32>, vector<8x128xf32> -> vector<8x128xf32>
    %c0_3 = arith.constant 0 : index
    %c0_4 = arith.constant 0 : index
    %3 = vector.load %arg3[%c0_3, %c0_4] : memref<1x128xf32, #tpu.memory_space<vmem>>, vector<1x128xf32>
    %4 = vector.broadcast %3 : vector<1x128xf32> to vector<8x128xf32>
    %5 = arith.addf %2, %4 : vector<8x128xf32>
    %cst_5 = arith.constant 0.000000e+00 : f32
    %6 = vector.broadcast %cst_5 : f32 to vector<8x128xf32>
    %7 = arith.cmpf ogt, %5, %6 : vector<8x128xf32>
    %8 = math.exp %5 : vector<8x128xf32>
    %cst_6 = arith.constant 1.000000e+00 : f32
    %9 = vector.broadcast %cst_6 : f32 to vector<8x128xf32>
    %10 = arith.subf %8, %9 : vector<8x128xf32>
    %cst_7 = arith.constant 1.67326319 : f32
    %11 = vector.broadcast %cst_7 : f32 to vector<8x128xf32>
    %12 = arith.mulf %11, %10 : vector<8x128xf32>
    %13 = arith.select %7, %5, %12 : vector<8x128xi1>, vector<8x128xf32>
    %cst_8 = arith.constant 1.05070102 : f32
    %14 = vector.broadcast %cst_8 : f32 to vector<8x128xf32>
    %15 = arith.mulf %14, %13 : vector<8x128xf32>
    %c0_9 = arith.constant 0 : index
    %c0_10 = arith.constant 0 : index
    %16 = vector.load %arg4[%c0_9, %c0_10] : memref<128x128xf32, #tpu.memory_space<vmem>>, vector<128x128xf32>
    %cst_11 = arith.constant dense<0.000000e+00> : vector<8x128xf32>
    %17 = tpu.matmul %15, %16, %cst_11 {dimension_numbers = #tpu.dot_dimension_numbers<[1], [0], [0], [1], [0, 0, 1, 1], [], []>} : vector<8x128xf32>, vector<128x128xf32>, vector<8x128xf32> -> vector<8x128xf32>
    %c0_12 = arith.constant 0 : index
    %c0_13 = arith.constant 0 : index
    %18 = vector.load %arg5[%c0_12, %c0_13] : memref<1x128xf32, #tpu.memory_space<vmem>>, vector<1x128xf32>
    %19 = vector.broadcast %18 : vector<1x128xf32> to vector<8x128xf32>
    %20 = arith.addf %17, %19 : vector<8x128xf32>
    %cst_14 = arith.constant 0.000000e+00 : f32
    %21 = vector.broadcast %cst_14 : f32 to vector<8x128xf32>
    %22 = arith.cmpf ogt, %20, %21 : vector<8x128xf32>
    %23 = math.exp %20 : vector<8x128xf32>
    %cst_15 = arith.constant 1.000000e+00 : f32
    %24 = vector.broadcast %cst_15 : f32 to vector<8x128xf32>
    %25 = arith.subf %23, %24 : vector<8x128xf32>
    %cst_16 = arith.constant 1.67326319 : f32
    %26 = vector.broadcast %cst_16 : f32 to vector<8x128xf32>
    %27 = arith.mulf %26, %25 : vector<8x128xf32>
    %28 = arith.select %22, %20, %27 : vector<8x128xi1>, vector<8x128xf32>
    %cst_17 = arith.constant 1.05070102 : f32
    %29 = vector.broadcast %cst_17 : f32 to vector<8x128xf32>
    %30 = arith.mulf %29, %28 : vector<8x128xf32>
    %c0_18 = arith.constant 0 : index
    %c0_19 = arith.constant 0 : index
    %31 = vector.load %arg6[%c0_18, %c0_19] : memref<128x128xf32, #tpu.memory_space<vmem>>, vector<128x128xf32>
    %cst_20 = arith.constant dense<0.000000e+00> : vector<8x128xf32>
    %32 = tpu.matmul %30, %31, %cst_20 {dimension_numbers = #tpu.dot_dimension_numbers<[1], [0], [0], [1], [0, 0, 1, 1], [], []>} : vector<8x128xf32>, vector<128x128xf32>, vector<8x128xf32> -> vector<8x128xf32>
    %c0_21 = arith.constant 0 : index
    %c0_22 = arith.constant 0 : index
    %33 = vector.load %arg7[%c0_21, %c0_22] : memref<1x128xf32, #tpu.memory_space<vmem>>, vector<1x128xf32>
    %34 = vector.broadcast %33 : vector<1x128xf32> to vector<8x128xf32>
    %35 = arith.addf %32, %34 : vector<8x128xf32>
    %36 = vector.extract_strided_slice %35 {offsets = [0, 0], sizes = [8, 2], strides = [1, 1]} : vector<8x128xf32> to vector<8x2xf32>
    %c0_23 = arith.constant 0 : index
    %c0_24 = arith.constant 0 : index
    %37 = vector.load %arg8[%c0_23, %c0_24] : memref<8x2xf32, #tpu.memory_space<vmem>>, vector<8x2xf32>
    tpu.vector_store %arg8[%c0_23, %c0_24], %36 {strides = array<i32>} : memref<8x2xf32, #tpu.memory_space<vmem>>, vector<8x2xf32>,
    return
  }
  func.func @transform_0(%arg0: i32) -> (i32, i32) {
    %c0_i32 = arith.constant 0 : i32
    %c0_i32_0 = arith.constant 0 : i32
    return %arg0, %c0_i32 : i32, i32
  }
  func.func @transform_1(%arg0: i32) -> (i32, i32) {
    %c0_i32 = arith.constant 0 : i32
    %c0_i32_0 = arith.constant 0 : i32
    %c0_i32_1 = arith.constant 0 : i32
    return %c0_i32, %c0_i32_0 : i32, i32
  }
  func.func @transform_2(%arg0: i32) -> (i32, i32) {
    %c0_i32 = arith.constant 0 : i32
    %c0_i32_0 = arith.constant 0 : i32
    %c0_i32_1 = arith.constant 0 : i32
    return %c0_i32, %c0_i32_0 : i32, i32
  }
  func.func @transform_3(%arg0: i32) -> (i32, i32) {
    %c0_i32 = arith.constant 0 : i32
    %c0_i32_0 = arith.constant 0 : i32
    %c0_i32_1 = arith.constant 0 : i32
    return %c0_i32, %c0_i32_0 : i32, i32
  }
  func.func @transform_4(%arg0: i32) -> (i32, i32) {
    %c0_i32 = arith.constant 0 : i32
    %c0_i32_0 = arith.constant 0 : i32
    %c0_i32_1 = arith.constant 0 : i32
    return %c0_i32, %c0_i32_0 : i32, i32
  }
  func.func @transform_5(%arg0: i32) -> (i32, i32) {
    %c0_i32 = arith.constant 0 : i32
    %c0_i32_0 = arith.constant 0 : i32
    %c0_i32_1 = arith.constant 0 : i32
    return %c0_i32, %c0_i32_0 : i32, i32
  }
  func.func @transform_6(%arg0: i32) -> (i32, i32) {
    %c0_i32 = arith.constant 0 : i32
    %c0_i32_0 = arith.constant 0 : i32
    %c0_i32_1 = arith.constant 0 : i32
    return %c0_i32, %c0_i32_0 : i32, i32
  }
  func.func @transform_7(%arg0: i32) -> (i32, i32) {
    %c0_i32 = arith.constant 0 : i32
    %c0_i32_0 = arith.constant 0 : i32
    return %arg0, %c0_i32 : i32, i32
  }
}

</mosaic_0001>

<llo_original>
// kernel: dqn_forward.1
$region0: #{dqn_forward.1}
  #allocation0 [shape = 'u32[]', space=smem, size = 0x4, offset = 0x4, fixed_abs, tag = 'smem constant byte address 0x4 - core index']
  #allocation1 [shape = 'u32[72,128]{1,0:T(1,128)}', space=vmem, size = 0x9000, scoped, tag = 'internal scratch']
  %s0 = inlined_call_operand.vmem [shape: f32[8,4], index: 0, kind: input, shape index: {}]
  %s1 = inlined_call_operand.vmem [shape: f32[4,128], index: 1, kind: input, shape index: {}]
  %s2 = inlined_call_operand.vmem [shape: f32[1,128], index: 2, kind: input, shape index: {}]
  %s3 = inlined_call_operand.hbm [shape: f32[128,128], index: 3, kind: input, shape index: {}]
  %s4 = inlined_call_operand.vmem [shape: f32[1,128], index: 4, kind: input, shape index: {}]
  %s5 = inlined_call_operand.hbm [shape: f32[128,128], index: 5, kind: input, shape index: {}]
  %s6 = inlined_call_operand.vmem [shape: f32[1,128], index: 6, kind: input, shape index: {}]
  %s7 = inlined_call_operand.vmem [shape: f32[8,2], index: 7, kind: output, shape index: {}]
  %s8 = sld [smem:[#allocation0]]
  $region46: #{dqn_forward.1} parent=0
    _
  %s10 = ssub.s32 1, %s8
  %s11 = scalar_select 0, %s10, %s8
  $region1: #{dqn_forward.1} parent=0
    #allocation2 [shape = 'u8[65536]{0}', space=vmem, size = 0x10000, scoped, tag = 'input window, operand 3, single buffered']
    #allocation3 [shape = 's32[1]{0}', space=sflag, size = 0x4, scoped, tag = 'scoped memory for dqn_forward.1']
    #allocation4 [shape = 'u8[65536]{0}', space=vmem, size = 0x10000, scoped, tag = 'input window, operand 5, single buffered']
    #allocation5 [shape = 's32[1]{0}', space=sflag, size = 0x4, scoped, tag = 'scoped memory for dqn_forward.1']
    %12 = vsyncpa [#allocation3], 0
    %13 = vsyncpa [#allocation5], 0
    // Predicated region
    $region2: #{dqn_forward.1} parent=1 // pred_check
      _
    $region3: #{dqn_forward.1} parent=1 // pred_check_branch
      %15 = sbr.rel (0) target = $region5
    $region4: #{dqn_forward.1} parent=1 // pred_region
      _
    $region5: #{dqn_forward.1} parent=1 // pred_fallthru
      _
    // Predicated region
    $region6: #{dqn_forward.1} parent=1 // pred_check
      _
    $region7: #{dqn_forward.1} parent=1 // pred_check_branch
      %17 = sbr.rel (0) target = $region9
    $region8: #{dqn_forward.1} parent=1 // pred_region
      _
    $region9: #{dqn_forward.1} parent=1 // pred_fallthru
      _
    // Predicated region
    $region10: #{dqn_forward.1} parent=1 // pred_check
      _
    $region11: #{dqn_forward.1} parent=1 // pred_check_branch
      %19 = sbr.rel (0) target = $region13
    $region12: #{dqn_forward.1} parent=1 // pred_region
      _
    $region13: #{dqn_forward.1} parent=1 // pred_fallthru
      _
    // Predicated region
    $region14: #{dqn_forward.1} parent=1 // pred_check
      _
    $region15: #{dqn_forward.1} parent=1 // pred_check_branch
      %21 = sbr.rel (0) target = $region17
    $region16: #{dqn_forward.1} parent=1 // pred_region
      %23 = vsyncadd [#allocation3], 0
      %s24 = sshll.u32 %s3, 4
      %s25 = int_to_ptr.hbm [resolvable:$true] %s24
      %s26 = sshll.u32 [#allocation2], 4
      %s27 = int_to_ptr.vmem [resolvable:$true] %s26
      %32 = dma.hbm_to_vmem [thread:$0]  %s25, 2048, %s27, [#allocation3], 128, 128, 8
    $region17: #{dqn_forward.1} parent=1 // pred_fallthru
      _
    // Predicated region
    $region18: #{dqn_forward.1} parent=1 // pred_check
      _
    $region19: #{dqn_forward.1} parent=1 // pred_check_branch
      %34 = sbr.rel (0) target = $region21
    $region20: #{dqn_forward.1} parent=1 // pred_region
      _
    $region21: #{dqn_forward.1} parent=1 // pred_fallthru
      _
    // Predicated region
    $region22: #{dqn_forward.1} parent=1 // pred_check
      _
    $region23: #{dqn_forward.1} parent=1 // pred_check_branch
      %36 = sbr.rel (0) target = $region25
    $region24: #{dqn_forward.1} parent=1 // pred_region
      %38 = vsyncadd [#allocation5], 0
      %s39 = sshll.u32 %s5, 4
      %s40 = int_to_ptr.hbm [resolvable:$true] %s39
      %s41 = sshll.u32 [#allocation4], 4
      %s42 = int_to_ptr.vmem [resolvable:$true] %s41
      %47 = dma.hbm_to_vmem [thread:$0]  %s40, 2048, %s42, [#allocation5], 128, 128, 8
    $region25: #{dqn_forward.1} parent=1 // pred_fallthru
      _
    // Predicated region
    $region26: #{dqn_forward.1} parent=1 // pred_check
      _
    $region27: #{dqn_forward.1} parent=1 // pred_check_branch
      %49 = sbr.rel (0) target = $region29
    $region28: #{dqn_forward.1} parent=1 // pred_region
      _
    $region29: #{dqn_forward.1} parent=1 // pred_fallthru
      _
    // Predicated region
    $region30: #{dqn_forward.1} parent=1 // pred_check
      _
    $region31: #{dqn_forward.1} parent=1 // pred_check_branch
      %51 = sbr.rel (0) target = $region33
    $region32: #{dqn_forward.1} parent=1 // pred_region
      %53 = dma.done [#allocation3], 2048
    $region33: #{dqn_forward.1} parent=1 // pred_fallthru
      _
    // Predicated region
    $region34: #{dqn_forward.1} parent=1 // pred_check
      _
    $region35: #{dqn_forward.1} parent=1 // pred_check_branch
      %55 = sbr.rel (0) target = $region37
    $region36: #{dqn_forward.1} parent=1 // pred_region
      %57 = dma.done [#allocation5], 2048
    $region37: #{dqn_forward.1} parent=1 // pred_fallthru
      _
    %v58 = vld [vmem:[%s0] sm:$0xff]
    %v59 = vld [vmem:[%s1] sm:$0xf]
    %v60 = vld [vmem:[%s2] sm:$0x1]
    %v62 = vperm.slane %v60, 0
    %vm64 = vcmask 31744
    %v66 = vsel %vm64, %v58, 0
    %vm68 = vcmask 1043456
    %v70 = vsel %vm68, %v59, 0
    %72 = vmatpush.msra.mxu0 0.0
    %73 = vmatpush.msra.mxu0 0.0
    %74 = vmatpush.msra.mxu0 0.0
    %75 = vmatpush.msra.mxu0 0.0
    %76 = vmatpush.msra.mxu0 0.0
    %77 = vmatpush.msra.mxu0 0.0
    %78 = vmatpush.msra.mxu0 0.0
    %79 = vmatpush.msra.mxu0 0.0
    %80 = vmatpush.msra.mxu0 0.0
    %81 = vmatpush.msra.mxu0 0.0
    %82 = vmatpush.msra.mxu0 0.0
    %83 = vmatpush.msra.mxu0 0.0
    %84 = vmatpush.msra.mxu0 0.0
    %85 = vmatpush.msra.mxu0 0.0
    %86 = vmatpush.msra.mxu0 0.0
    %87 = vmatpush.msra.mxu0 %v70
    %88 = vmatmul.f32.gmra.mxu0 %v66
    %v89 = vpop.f32.mrf.mxu0
    %v90 = vadd.f32 %v62, %v89
    %91 = vdwg.mxu0
    %vm92 = vcmp.gt.f32.partialorder %v90, 0.0
    %v93 = vmul.f32 %v90, 1.442695
    %v94 = vpow.pop %v93
    %v95 = vsub.f32 %v94, 1.0
    %v96 = vmul.f32 %v95, 1.6732632
    %v97 = vsel %vm92, %v90, %v96
    %v98 = vmul.f32 %v97, 1.050701
    %v99 = vld [vmem:[#allocation2] sm:$0xff]
    %v100 = vld [vmem:[#allocation2 + $0x8] sm:$0xff]
    %v101 = vld [vmem:[#allocation2 + $0x10] sm:$0xff]
    %v102 = vld [vmem:[#allocation2 + $0x18] sm:$0xff]
    %v103 = vld [vmem:[#allocation2 + $0x20] sm:$0xff]
    %v104 = vld [vmem:[#allocation2 + $0x28] sm:$0xff]
    %v105 = vld [vmem:[#allocation2 + $0x30] sm:$0xff]
    %v106 = vld [vmem:[#allocation2 + $0x38] sm:$0xff]
    %v107 = vld [vmem:[#allocation2 + $0x40] sm:$0xff]
    %v108 = vld [vmem:[#allocation2 + $0x48] sm:$0xff]
    %v109 = vld [vmem:[#allocation2 + $0x50] sm:$0xff]
    %v110 = vld [vmem:[#allocation2 + $0x58] sm:$0xff]
    %v111 = vld [vmem:[#allocation2 + $0x60] sm:$0xff]
    %v112 = vld [vmem:[#allocation2 + $0x68] sm:$0xff]
    %v113 = vld [vmem:[#allocation2 + $0x70] sm:$0xff]
    %v114 = vld [vmem:[#allocation2 + $0x78] sm:$0xff]
    %v115 = vld [vmem:[%s4] sm:$0x1]
    %v117 = vperm.slane %v115, 0
    %119 = vmatpush.msra.mxu0 %v114
    %120 = vmatpush.msra.mxu0 %v113
    %121 = vmatpush.msra.mxu0 %v112
    %122 = vmatpush.msra.mxu0 %v111
    %123 = vmatpush.msra.mxu0 %v110
    %124 = vmatpush.msra.mxu0 %v109
    %125 = vmatpush.msra.mxu0 %v108
    %126 = vmatpush.msra.mxu0 %v107
    %127 = vmatpush.msra.mxu0 %v106
    %128 = vmatpush.msra.mxu0 %v105
    %129 = vmatpush.msra.mxu0 %v104
    %130 = vmatpush.msra.mxu0 %v103
    %131 = vmatpush.msra.mxu0 %v102
    %132 = vmatpush.msra.mxu0 %v101
    %133 = vmatpush.msra.mxu0 %v100
    %134 = vmatpush.msra.mxu0 %v99
    %135 = vmatmul.f32.gmra.mxu0 %v98
    %v136 = vpop.f32.mrf.mxu0
    %v137 = vadd.f32 %v117, %v136
    %138 = vdwg.mxu0
    %vm139 = vcmp.gt.f32.partialorder %v137, 0.0
    %v140 = vmul.f32 %v137, 1.442695
    %v141 = vpow.pop %v140
    %v142 = vsub.f32 %v141, 1.0
    %v143 = vmul.f32 %v142, 1.6732632
    %v144 = vsel %vm139, %v137, %v143
    %v145 = vmul.f32 %v144, 1.050701
    %v146 = vld [vmem:[#allocation4] sm:$0xff]
    %v147 = vld [vmem:[#allocation4 + $0x8] sm:$0xff]
    %v148 = vld [vmem:[#allocation4 + $0x10] sm:$0xff]
    %v149 = vld [vmem:[#allocation4 + $0x18] sm:$0xff]
    %v150 = vld [vmem:[#allocation4 + $0x20] sm:$0xff]
    %v151 = vld [vmem:[#allocation4 + $0x28] sm:$0xff]
    %v152 = vld [vmem:[#allocation4 + $0x30] sm:$0xff]
    %v153 = vld [vmem:[#allocation4 + $0x38] sm:$0xff]
    %v154 = vld [vmem:[#allocation4 + $0x40] sm:$0xff]
    %v155 = vld [vmem:[#allocation4 + $0x48] sm:$0xff]
    %v156 = vld [vmem:[#allocation4 + $0x50] sm:$0xff]
    %v157 = vld [vmem:[#allocation4 + $0x58] sm:$0xff]
    %v158 = vld [vmem:[#allocation4 + $0x60] sm:$0xff]
    %v159 = vld [vmem:[#allocation4 + $0x68] sm:$0xff]
    %v160 = vld [vmem:[#allocation4 + $0x70] sm:$0xff]
    %v161 = vld [vmem:[#allocation4 + $0x78] sm:$0xff]
    %v162 = vld [vmem:[%s6] sm:$0x1]
    %v164 = vperm.slane %v162, 0
    %166 = vmatpush.msra.mxu0 %v161
    %167 = vmatpush.msra.mxu0 %v160
    %168 = vmatpush.msra.mxu0 %v159
    %169 = vmatpush.msra.mxu0 %v158
    %170 = vmatpush.msra.mxu0 %v157
    %171 = vmatpush.msra.mxu0 %v156
    %172 = vmatpush.msra.mxu0 %v155
    %173 = vmatpush.msra.mxu0 %v154
    %174 = vmatpush.msra.mxu0 %v153
    %175 = vmatpush.msra.mxu0 %v152
    %176 = vmatpush.msra.mxu0 %v151
    %177 = vmatpush.msra.mxu0 %v150
    %178 = vmatpush.msra.mxu0 %v149
    %179 = vmatpush.msra.mxu0 %v148
    %180 = vmatpush.msra.mxu0 %v147
    %181 = vmatpush.msra.mxu0 %v146
    %182 = vmatmul.f32.gmra.mxu0 %v145
    %v183 = vpop.f32.mrf.mxu0
    %v184 = vadd.f32 %v164, %v183
    %185 = vdwg.mxu0
    %vm186 = vcmask 15360
    %187 = vst.msk [vmem:[%s7] sm:$0xff] %vm186, %v184
    // Predicated region
    $region38: #{dqn_forward.1} parent=1 // pred_check
      _
    $region39: #{dqn_forward.1} parent=1 // pred_check_branch
      %189 = sbr.rel (0) target = $region41
    $region40: #{dqn_forward.1} parent=1 // pred_region
      _
    $region41: #{dqn_forward.1} parent=1 // pred_fallthru
      _
    // Predicated region
    $region42: #{dqn_forward.1} parent=1 // pred_check
      _
    $region43: #{dqn_forward.1} parent=1 // pred_check_branch
      %191 = sbr.rel (0) target = $region45
    $region44: #{dqn_forward.1} parent=1 // pred_region
      _
    $region45: #{dqn_forward.1} parent=1 // pred_fallthru
      _
    %192 = vsyncpa [#allocation3], 1
    %193 = vsyncpa [#allocation5], 1

</llo_original>
